<compile_context>
chip_gen: v7x
topology: tpu7x:2x2x1
jax: 0.10.0
libtpu: 0.0.40
codegen_flags: <defaults>
</compile_context>

<pallas_src>
import jax
import jax.numpy as jnp
from jax.experimental import pallas as pl
from jax.experimental.pallas import tpu as pltpu

NUM_EMB = 100   # nn.Embedding(100, hidden_channels)
HIDDEN = 32     # hidden_channels
N_NODES = 16    # number of input rows ("atoms")


# ------------------------------ fused kernel -------------------------------

def emb_fused_kernel(z_ref,                    # SMEM  [N]      int32 indices
                     z1_ref, z2_ref, z3_ref,   # VMEM  [N, 1]   f32
                     table_ref,                # VMEM  [100, H] f32
                     w1_ref, b1_ref,           # VMEM  [1, H]   f32 (pre-transposed)
                     w2_ref, b2_ref,
                     w3_ref, b3_ref,
                     x0_ref, x1_ref, x2_ref, x3_ref):   # VMEM [N, H] outputs
    n = x0_ref.shape[0]

    # --- Embedding(z): per-row gather from the VMEM-resident table.
    # Indices come from SMEM; each row is a dynamic sublane slice of the
    # table and a static-offset store into the output.  N is tiny and static,
    # so the loop is fully unrolled at trace time.
    for i in range(n):
        idx = z_ref[i]                                   # scalar from SMEM
        x0_ref[pl.ds(i, 1), :] = table_ref[pl.ds(idx, 1), :]

    # --- Linear(1 -> H) x3: pure VPU broadcast fused multiply-add.
    # Weight is stored as a [1, H] row (already W^T), so y = z * w + b.
    x1_ref[...] = z1_ref[...] * w1_ref[...] + b1_ref[...]
    x2_ref[...] = z2_ref[...] * w2_ref[...] + b2_ref[...]
    x3_ref[...] = z3_ref[...] * w3_ref[...] + b3_ref[...]


# -------------------------------- wrapper ----------------------------------

def emb_forward(params, z, z1, z2, z3):
    n = z.shape[0]
    h = params["emb_table"].shape[1]

    vmem = pl.BlockSpec(memory_space=pltpu.MemorySpace.VMEM)
    smem = pl.BlockSpec(memory_space=pltpu.MemorySpace.SMEM)
    out_sds = jax.ShapeDtypeStruct((n, h), jnp.float32)

    return pl.pallas_call(
        emb_fused_kernel,
        out_shape=(out_sds, out_sds, out_sds, out_sds),
        in_specs=[smem] + [vmem] * 10,
        out_specs=(vmem, vmem, vmem, vmem),
    )(
        z.astype(jnp.int32), z1, z2, z3,
        params["emb_table"],
        params["lin1_w"], params["lin1_b"],
        params["lin2_w"], params["lin2_b"],
        params["lin3_w"], params["lin3_b"],
    )


# ------------------------------- parameters --------------------------------

def init_params(key, hidden=HIDDEN):
    k_emb, k1w, k1b, k2w, k2b, k3w, k3b = jax.random.split(key, 7)

    # nn.Linear(1, H): weight [H, 1], bias [H], both U(-1, 1) (bound=1/sqrt(1)).
    # Stored pre-transposed as [1, H] rows so the kernel needs no transpose.
    def lin(kw, kb):
        w_row = jax.random.uniform(kw, (1, hidden), jnp.float32, -1.0, 1.0)
        b_row = jax.random.uniform(kb, (1, hidden), jnp.float32, -1.0, 1.0)
        return w_row, b_row

    params = {
        # nn.Embedding(100, H): weight ~ N(0, 1)
        "emb_table": jax.random.normal(k_emb, (NUM_EMB, hidden), jnp.float32),
    }
    for name, (kw, kb) in zip(("lin1", "lin2", "lin3"),
                              ((k1w, k1b), (k2w, k2b), (k3w, k3b))):
        w, b = lin(kw, kb)
        params[name + "_w"], params[name + "_b"] = w, b
    return params


# ------------------------------ pure-JAX ref --------------------------------

def emb_reference(params, z, z1, z2, z3):
    x0 = params["emb_table"][z]
    x1 = z1 * params["lin1_w"] + params["lin1_b"]
    x2 = z2 * params["lin2_w"] + params["lin2_b"]
    x3 = z3 * params["lin3_w"] + params["lin3_b"]
    return x0, x1, x2, x3


# --------------------------------- driver ----------------------------------

if __name__ == "__main__":
    key = jax.random.PRNGKey(0)
    k_param, k_z, k_z1, k_z2, k_z3 = jax.random.split(key, 5)

    params = init_params(k_param)

    z = jax.random.randint(k_z, (N_NODES,), 0, NUM_EMB, dtype=jnp.int32)
    z1 = jax.random.normal(k_z1, (N_NODES, 1), jnp.float32)
    z2 = jax.random.normal(k_z2, (N_NODES, 1), jnp.float32)
    z3 = jax.random.normal(k_z3, (N_NODES, 1), jnp.float32)

    outs = jax.jit(emb_forward)(params, z, z1, z2, z3)
    outs = jax.block_until_ready(outs)

    refs = emb_reference(params, z, z1, z2, z3)

    for o, r in zip(outs, refs):
        assert o.shape == (N_NODES, HIDDEN) and o.dtype == jnp.float32
        assert bool(jnp.all(jnp.isfinite(o)))
        assert bool(jnp.allclose(o, r, rtol=1e-6, atol=1e-6))

    print("KERNEL_OK")
</pallas_src>

<mosaic_0001>
module attributes {stable_mosaic.version = 11 : i64} {
  func.func @emb_fused_kernel(%arg0: memref<16xi32, #tpu.memory_space<smem>>, %arg1: memref<16x1xf32, #tpu.memory_space<vmem>>, %arg2: memref<16x1xf32, #tpu.memory_space<vmem>>, %arg3: memref<16x1xf32, #tpu.memory_space<vmem>>, %arg4: memref<100x32xf32, #tpu.memory_space<vmem>>, %arg5: memref<1x32xf32, #tpu.memory_space<vmem>>, %arg6: memref<1x32xf32, #tpu.memory_space<vmem>>, %arg7: memref<1x32xf32, #tpu.memory_space<vmem>>, %arg8: memref<1x32xf32, #tpu.memory_space<vmem>>, %arg9: memref<1x32xf32, #tpu.memory_space<vmem>>, %arg10: memref<1x32xf32, #tpu.memory_space<vmem>>, %arg11: memref<16x32xf32, #tpu.memory_space<vmem>>, %arg12: memref<16x32xf32, #tpu.memory_space<vmem>>, %arg13: memref<16x32xf32, #tpu.memory_space<vmem>>, %arg14: memref<16x32xf32, #tpu.memory_space<vmem>>) attributes {dimension_semantics = [], scalar_prefetch = 0 : i64, scratch_operands = 0 : i64, tpu.core_type = #tpu.core_type<tc>} {
    %c0 = arith.constant 0 : index
    %0 = memref.load %arg0[%c0] : memref<16xi32, #tpu.memory_space<smem>>
    %1 = arith.index_cast %0 : i32 to index
    %c0_0 = arith.constant 0 : index
    %2 = vector.load %arg4[%1, %c0_0] : memref<100x32xf32, #tpu.memory_space<vmem>>, vector<1x32xf32>
    %c0_1 = arith.constant 0 : index
    %c0_2 = arith.constant 0 : index
    %3 = vector.load %arg11[%c0_1, %c0_2] : memref<16x32xf32, #tpu.memory_space<vmem>>, vector<1x32xf32>
    tpu.vector_store %arg11[%c0_1, %c0_2], %2 {strides = array<i32>} : memref<16x32xf32, #tpu.memory_space<vmem>>, vector<1x32xf32>,
    %c1 = arith.constant 1 : index
    %4 = memref.load %arg0[%c1] : memref<16xi32, #tpu.memory_space<smem>>
    %5 = arith.index_cast %4 : i32 to index
    %c0_3 = arith.constant 0 : index
    %6 = vector.load %arg4[%5, %c0_3] : memref<100x32xf32, #tpu.memory_space<vmem>>, vector<1x32xf32>
    %c1_4 = arith.constant 1 : index
    %c0_5 = arith.constant 0 : index
    %7 = vector.load %arg11[%c1_4, %c0_5] : memref<16x32xf32, #tpu.memory_space<vmem>>, vector<1x32xf32>
    tpu.vector_store %arg11[%c1_4, %c0_5], %6 {strides = array<i32>} : memref<16x32xf32, #tpu.memory_space<vmem>>, vector<1x32xf32>,
    %c2 = arith.constant 2 : index
    %8 = memref.load %arg0[%c2] : memref<16xi32, #tpu.memory_space<smem>>
    %9 = arith.index_cast %8 : i32 to index
    %c0_6 = arith.constant 0 : index
    %10 = vector.load %arg4[%9, %c0_6] : memref<100x32xf32, #tpu.memory_space<vmem>>, vector<1x32xf32>
    %c2_7 = arith.constant 2 : index
    %c0_8 = arith.constant 0 : index
    %11 = vector.load %arg11[%c2_7, %c0_8] : memref<16x32xf32, #tpu.memory_space<vmem>>, vector<1x32xf32>
    tpu.vector_store %arg11[%c2_7, %c0_8], %10 {strides = array<i32>} : memref<16x32xf32, #tpu.memory_space<vmem>>, vector<1x32xf32>,
    %c3 = arith.constant 3 : index
    %12 = memref.load %arg0[%c3] : memref<16xi32, #tpu.memory_space<smem>>
    %13 = arith.index_cast %12 : i32 to index
    %c0_9 = arith.constant 0 : index
    %14 = vector.load %arg4[%13, %c0_9] : memref<100x32xf32, #tpu.memory_space<vmem>>, vector<1x32xf32>
    %c3_10 = arith.constant 3 : index
    %c0_11 = arith.constant 0 : index
    %15 = vector.load %arg11[%c3_10, %c0_11] : memref<16x32xf32, #tpu.memory_space<vmem>>, vector<1x32xf32>
    tpu.vector_store %arg11[%c3_10, %c0_11], %14 {strides = array<i32>} : memref<16x32xf32, #tpu.memory_space<vmem>>, vector<1x32xf32>,
    %c4 = arith.constant 4 : index
    %16 = memref.load %arg0[%c4] : memref<16xi32, #tpu.memory_space<smem>>
    %17 = arith.index_cast %16 : i32 to index
    %c0_12 = arith.constant 0 : index
    %18 = vector.load %arg4[%17, %c0_12] : memref<100x32xf32, #tpu.memory_space<vmem>>, vector<1x32xf32>
    %c4_13 = arith.constant 4 : index
    %c0_14 = arith.constant 0 : index
    %19 = vector.load %arg11[%c4_13, %c0_14] : memref<16x32xf32, #tpu.memory_space<vmem>>, vector<1x32xf32>
    tpu.vector_store %arg11[%c4_13, %c0_14], %18 {strides = array<i32>} : memref<16x32xf32, #tpu.memory_space<vmem>>, vector<1x32xf32>,
    %c5 = arith.constant 5 : index
    %20 = memref.load %arg0[%c5] : memref<16xi32, #tpu.memory_space<smem>>
    %21 = arith.index_cast %20 : i32 to index
    %c0_15 = arith.constant 0 : index
    %22 = vector.load %arg4[%21, %c0_15] : memref<100x32xf32, #tpu.memory_space<vmem>>, vector<1x32xf32>
    %c5_16 = arith.constant 5 : index
    %c0_17 = arith.constant 0 : index
    %23 = vector.load %arg11[%c5_16, %c0_17] : memref<16x32xf32, #tpu.memory_space<vmem>>, vector<1x32xf32>
    tpu.vector_store %arg11[%c5_16, %c0_17], %22 {strides = array<i32>} : memref<16x32xf32, #tpu.memory_space<vmem>>, vector<1x32xf32>,
    %c6 = arith.constant 6 : index
    %24 = memref.load %arg0[%c6] : memref<16xi32, #tpu.memory_space<smem>>
    %25 = arith.index_cast %24 : i32 to index
    %c0_18 = arith.constant 0 : index
    %26 = vector.load %arg4[%25, %c0_18] : memref<100x32xf32, #tpu.memory_space<vmem>>, vector<1x32xf32>
    %c6_19 = arith.constant 6 : index
    %c0_20 = arith.constant 0 : index
    %27 = vector.load %arg11[%c6_19, %c0_20] : memref<16x32xf32, #tpu.memory_space<vmem>>, vector<1x32xf32>
    tpu.vector_store %arg11[%c6_19, %c0_20], %26 {strides = array<i32>} : memref<16x32xf32, #tpu.memory_space<vmem>>, vector<1x32xf32>,
    %c7 = arith.constant 7 : index
    %28 = memref.load %arg0[%c7] : memref<16xi32, #tpu.memory_space<smem>>
    %29 = arith.index_cast %28 : i32 to index
    %c0_21 = arith.constant 0 : index
    %30 = vector.load %arg4[%29, %c0_21] : memref<100x32xf32, #tpu.memory_space<vmem>>, vector<1x32xf32>
    %c7_22 = arith.constant 7 : index
    %c0_23 = arith.constant 0 : index
    %31 = vector.load %arg11[%c7_22, %c0_23] : memref<16x32xf32, #tpu.memory_space<vmem>>, vector<1x32xf32>
    tpu.vector_store %arg11[%c7_22, %c0_23], %30 {strides = array<i32>} : memref<16x32xf32, #tpu.memory_space<vmem>>, vector<1x32xf32>,
    %c8 = arith.constant 8 : index
    %32 = memref.load %arg0[%c8] : memref<16xi32, #tpu.memory_space<smem>>
    %33 = arith.index_cast %32 : i32 to index
    %c0_24 = arith.constant 0 : index
    %34 = vector.load %arg4[%33, %c0_24] : memref<100x32xf32, #tpu.memory_space<vmem>>, vector<1x32xf32>
    %c8_25 = arith.constant 8 : index
    %c0_26 = arith.constant 0 : index
    %35 = vector.load %arg11[%c8_25, %c0_26] : memref<16x32xf32, #tpu.memory_space<vmem>>, vector<1x32xf32>
    tpu.vector_store %arg11[%c8_25, %c0_26], %34 {strides = array<i32>} : memref<16x32xf32, #tpu.memory_space<vmem>>, vector<1x32xf32>,
    %c9 = arith.constant 9 : index
    %36 = memref.load %arg0[%c9] : memref<16xi32, #tpu.memory_space<smem>>
    %37 = arith.index_cast %36 : i32 to index
    %c0_27 = arith.constant 0 : index
    %38 = vector.load %arg4[%37, %c0_27] : memref<100x32xf32, #tpu.memory_space<vmem>>, vector<1x32xf32>
    %c9_28 = arith.constant 9 : index
    %c0_29 = arith.constant 0 : index
    %39 = vector.load %arg11[%c9_28, %c0_29] : memref<16x32xf32, #tpu.memory_space<vmem>>, vector<1x32xf32>
    tpu.vector_store %arg11[%c9_28, %c0_29], %38 {strides = array<i32>} : memref<16x32xf32, #tpu.memory_space<vmem>>, vector<1x32xf32>,
    %c10 = arith.constant 10 : index
    %40 = memref.load %arg0[%c10] : memref<16xi32, #tpu.memory_space<smem>>
    %41 = arith.index_cast %40 : i32 to index
    %c0_30 = arith.constant 0 : index
    %42 = vector.load %arg4[%41, %c0_30] : memref<100x32xf32, #tpu.memory_space<vmem>>, vector<1x32xf32>
    %c10_31 = arith.constant 10 : index
    %c0_32 = arith.constant 0 : index
    %43 = vector.load %arg11[%c10_31, %c0_32] : memref<16x32xf32, #tpu.memory_space<vmem>>, vector<1x32xf32>
    tpu.vector_store %arg11[%c10_31, %c0_32], %42 {strides = array<i32>} : memref<16x32xf32, #tpu.memory_space<vmem>>, vector<1x32xf32>,
    %c11 = arith.constant 11 : index
    %44 = memref.load %arg0[%c11] : memref<16xi32, #tpu.memory_space<smem>>
    %45 = arith.index_cast %44 : i32 to index
    %c0_33 = arith.constant 0 : index
    %46 = vector.load %arg4[%45, %c0_33] : memref<100x32xf32, #tpu.memory_space<vmem>>, vector<1x32xf32>
    %c11_34 = arith.constant 11 : index
    %c0_35 = arith.constant 0 : index
    %47 = vector.load %arg11[%c11_34, %c0_35] : memref<16x32xf32, #tpu.memory_space<vmem>>, vector<1x32xf32>
    tpu.vector_store %arg11[%c11_34, %c0_35], %46 {strides = array<i32>} : memref<16x32xf32, #tpu.memory_space<vmem>>, vector<1x32xf32>,
    %c12 = arith.constant 12 : index
    %48 = memref.load %arg0[%c12] : memref<16xi32, #tpu.memory_space<smem>>
    %49 = arith.index_cast %48 : i32 to index
    %c0_36 = arith.constant 0 : index
    %50 = vector.load %arg4[%49, %c0_36] : memref<100x32xf32, #tpu.memory_space<vmem>>, vector<1x32xf32>
    %c12_37 = arith.constant 12 : index
    %c0_38 = arith.constant 0 : index
    %51 = vector.load %arg11[%c12_37, %c0_38] : memref<16x32xf32, #tpu.memory_space<vmem>>, vector<1x32xf32>
    tpu.vector_store %arg11[%c12_37, %c0_38], %50 {strides = array<i32>} : memref<16x32xf32, #tpu.memory_space<vmem>>, vector<1x32xf32>,
    %c13 = arith.constant 13 : index
    %52 = memref.load %arg0[%c13] : memref<16xi32, #tpu.memory_space<smem>>
    %53 = arith.index_cast %52 : i32 to index
    %c0_39 = arith.constant 0 : index
    %54 = vector.load %arg4[%53, %c0_39] : memref<100x32xf32, #tpu.memory_space<vmem>>, vector<1x32xf32>
    %c13_40 = arith.constant 13 : index
    %c0_41 = arith.constant 0 : index
    %55 = vector.load %arg11[%c13_40, %c0_41] : memref<16x32xf32, #tpu.memory_space<vmem>>, vector<1x32xf32>
    tpu.vector_store %arg11[%c13_40, %c0_41], %54 {strides = array<i32>} : memref<16x32xf32, #tpu.memory_space<vmem>>, vector<1x32xf32>,
    %c14 = arith.constant 14 : index
    %56 = memref.load %arg0[%c14] : memref<16xi32, #tpu.memory_space<smem>>
    %57 = arith.index_cast %56 : i32 to index
    %c0_42 = arith.constant 0 : index
    %58 = vector.load %arg4[%57, %c0_42] : memref<100x32xf32, #tpu.memory_space<vmem>>, vector<1x32xf32>
    %c14_43 = arith.constant 14 : index
    %c0_44 = arith.constant 0 : index
    %59 = vector.load %arg11[%c14_43, %c0_44] : memref<16x32xf32, #tpu.memory_space<vmem>>, vector<1x32xf32>
    tpu.vector_store %arg11[%c14_43, %c0_44], %58 {strides = array<i32>} : memref<16x32xf32, #tpu.memory_space<vmem>>, vector<1x32xf32>,
    %c15 = arith.constant 15 : index
    %60 = memref.load %arg0[%c15] : memref<16xi32, #tpu.memory_space<smem>>
    %61 = arith.index_cast %60 : i32 to index
    %c0_45 = arith.constant 0 : index
    %62 = vector.load %arg4[%61, %c0_45] : memref<100x32xf32, #tpu.memory_space<vmem>>, vector<1x32xf32>
    %c15_46 = arith.constant 15 : index
    %c0_47 = arith.constant 0 : index
    %63 = vector.load %arg11[%c15_46, %c0_47] : memref<16x32xf32, #tpu.memory_space<vmem>>, vector<1x32xf32>
    tpu.vector_store %arg11[%c15_46, %c0_47], %62 {strides = array<i32>} : memref<16x32xf32, #tpu.memory_space<vmem>>, vector<1x32xf32>,
    %c0_48 = arith.constant 0 : index
    %c0_49 = arith.constant 0 : index
    %64 = vector.load %arg1[%c0_48, %c0_49] : memref<16x1xf32, #tpu.memory_space<vmem>>, vector<16x1xf32>
    %c0_50 = arith.constant 0 : index
    %c0_51 = arith.constant 0 : index
    %65 = vector.load %arg5[%c0_50, %c0_51] : memref<1x32xf32, #tpu.memory_space<vmem>>, vector<1x32xf32>
    %66 = vector.broadcast %64 : vector<16x1xf32> to vector<16x32xf32>
    %67 = vector.broadcast %65 : vector<1x32xf32> to vector<16x32xf32>
    %68 = arith.mulf %66, %67 : vector<16x32xf32>
    %c0_52 = arith.constant 0 : index
    %c0_53 = arith.constant 0 : index
    %69 = vector.load %arg6[%c0_52, %c0_53] : memref<1x32xf32, #tpu.memory_space<vmem>>, vector<1x32xf32>
    %70 = vector.broadcast %69 : vector<1x32xf32> to vector<16x32xf32>
    %71 = arith.addf %68, %70 : vector<16x32xf32>
    %c0_54 = arith.constant 0 : index
    %c0_55 = arith.constant 0 : index
    %72 = vector.load %arg12[%c0_54, %c0_55] : memref<16x32xf32, #tpu.memory_space<vmem>>, vector<16x32xf32>
    tpu.vector_store %arg12[%c0_54, %c0_55], %71 {strides = array<i32>} : memref<16x32xf32, #tpu.memory_space<vmem>>, vector<16x32xf32>,
    %c0_56 = arith.constant 0 : index
    %c0_57 = arith.constant 0 : index
    %73 = vector.load %arg2[%c0_56, %c0_57] : memref<16x1xf32, #tpu.memory_space<vmem>>, vector<16x1xf32>
    %c0_58 = arith.constant 0 : index
    %c0_59 = arith.constant 0 : index
    %74 = vector.load %arg7[%c0_58, %c0_59] : memref<1x32xf32, #tpu.memory_space<vmem>>, vector<1x32xf32>
    %75 = vector.broadcast %73 : vector<16x1xf32> to vector<16x32xf32>
    %76 = vector.broadcast %74 : vector<1x32xf32> to vector<16x32xf32>
    %77 = arith.mulf %75, %76 : vector<16x32xf32>
    %c0_60 = arith.constant 0 : index
    %c0_61 = arith.constant 0 : index
    %78 = vector.load %arg8[%c0_60, %c0_61] : memref<1x32xf32, #tpu.memory_space<vmem>>, vector<1x32xf32>
    %79 = vector.broadcast %78 : vector<1x32xf32> to vector<16x32xf32>
    %80 = arith.addf %77, %79 : vector<16x32xf32>
    %c0_62 = arith.constant 0 : index
    %c0_63 = arith.constant 0 : index
    %81 = vector.load %arg13[%c0_62, %c0_63] : memref<16x32xf32, #tpu.memory_space<vmem>>, vector<16x32xf32>
    tpu.vector_store %arg13[%c0_62, %c0_63], %80 {strides = array<i32>} : memref<16x32xf32, #tpu.memory_space<vmem>>, vector<16x32xf32>,
    %c0_64 = arith.constant 0 : index
    %c0_65 = arith.constant 0 : index
    %82 = vector.load %arg3[%c0_64, %c0_65] : memref<16x1xf32, #tpu.memory_space<vmem>>, vector<16x1xf32>
    %c0_66 = arith.constant 0 : index
    %c0_67 = arith.constant 0 : index
    %83 = vector.load %arg9[%c0_66, %c0_67] : memref<1x32xf32, #tpu.memory_space<vmem>>, vector<1x32xf32>
    %84 = vector.broadcast %82 : vector<16x1xf32> to vector<16x32xf32>
    %85 = vector.broadcast %83 : vector<1x32xf32> to vector<16x32xf32>
    %86 = arith.mulf %84, %85 : vector<16x32xf32>
    %c0_68 = arith.constant 0 : index
    %c0_69 = arith.constant 0 : index
    %87 = vector.load %arg10[%c0_68, %c0_69] : memref<1x32xf32, #tpu.memory_space<vmem>>, vector<1x32xf32>
    %88 = vector.broadcast %87 : vector<1x32xf32> to vector<16x32xf32>
    %89 = arith.addf %86, %88 : vector<16x32xf32>
    %c0_70 = arith.constant 0 : index
    %c0_71 = arith.constant 0 : index
    %90 = vector.load %arg14[%c0_70, %c0_71] : memref<16x32xf32, #tpu.memory_space<vmem>>, vector<16x32xf32>
    tpu.vector_store %arg14[%c0_70, %c0_71], %89 {strides = array<i32>} : memref<16x32xf32, #tpu.memory_space<vmem>>, vector<16x32xf32>,
    return
  }
}

</mosaic_0001>

<llo_original>
// kernel: emb_forward.1
$region0: #{emb_forward.1}
  #allocation0 [shape = 'u32[]', space=smem, size = 0x4, offset = 0x4, fixed_abs, tag = 'smem constant byte address 0x4 - core index']
  #allocation1 [shape = 'u32[144,128]{1,0:T(1,128)}', space=vmem, size = 0x12000, scoped, tag = 'internal scratch']
  %s0 = inlined_call_operand.vmem [shape: s32[16], index: 0, kind: input, shape index: {}]
  %s1 = inlined_call_operand.vmem [shape: f32[16,1], index: 1, kind: input, shape index: {}]
  %s2 = inlined_call_operand.vmem [shape: f32[16,1], index: 2, kind: input, shape index: {}]
  %s3 = inlined_call_operand.vmem [shape: f32[16,1], index: 3, kind: input, shape index: {}]
  %s4 = inlined_call_operand.vmem [shape: f32[100,32], index: 4, kind: input, shape index: {}]
  %s5 = inlined_call_operand.vmem [shape: f32[1,32], index: 5, kind: input, shape index: {}]
  %s6 = inlined_call_operand.vmem [shape: f32[1,32], index: 6, kind: input, shape index: {}]
  %s7 = inlined_call_operand.vmem [shape: f32[1,32], index: 7, kind: input, shape index: {}]
  %s8 = inlined_call_operand.vmem [shape: f32[1,32], index: 8, kind: input, shape index: {}]
  %s9 = inlined_call_operand.vmem [shape: f32[1,32], index: 9, kind: input, shape index: {}]
  %s10 = inlined_call_operand.vmem [shape: f32[1,32], index: 10, kind: input, shape index: {}]
  %s11 = inlined_call_operand.hbm [shape: f32[16,32], index: 11, kind: output, shape index: {0}]
  %s12 = inlined_call_operand.hbm [shape: f32[16,32], index: 12, kind: output, shape index: {1}]
  %s13 = inlined_call_operand.hbm [shape: f32[16,32], index: 13, kind: output, shape index: {2}]
  %s14 = inlined_call_operand.hbm [shape: f32[16,32], index: 14, kind: output, shape index: {3}]
  %15 = xla_tuple %s11, %s12, %s13, %s14
  %s16 = sld [smem:[#allocation0]]
  $region82: #{emb_forward.1} parent=0
    _
  %s18 = ssub.s32 1, %s16
  %s19 = scalar_select 0, %s18, %s16
  $region1: #{emb_forward.1} parent=0
    #allocation2 [shape = 'u8[512]{0}', space=smem, size = 0x200, scoped, tag = 'input window, operand 0, single buffered']
    #allocation3 [shape = 's32[1]{0}', space=sflag, size = 0x4, scoped, tag = 'scoped memory for emb_forward.1']
    #allocation4 [shape = 's32[1]{0}', space=sflag, size = 0x4, scoped, tag = 'scoped memory for emb_forward.1']
    #allocation5 [shape = 'u8[8192]{0}', space=vmem, size = 0x2000, scoped, tag = 'output window, operand 0, single buffered']
    #allocation6 [shape = 'u8[8192]{0}', space=vmem, size = 0x2000, scoped, tag = 'output window, operand 1, single buffered']
    #allocation7 [shape = 's32[1]{0}', space=sflag, size = 0x4, scoped, tag = 'scoped memory for emb_forward.1']
    #allocation8 [shape = 'u8[8192]{0}', space=vmem, size = 0x2000, scoped, tag = 'output window, operand 2, single buffered']
    #allocation9 [shape = 'u8[8192]{0}', space=vmem, size = 0x2000, scoped, tag = 'output window, operand 3, single buffered']
    #allocation10 [shape = 's32[1]{0}', space=sflag, size = 0x4, scoped, tag = 'scoped memory for emb_forward.1']
    %20 = vsyncpa [#allocation4], 0
    %21 = vsyncpa [#allocation3], 0
    %22 = vsyncpa [#allocation7], 0
    %23 = vsyncpa [#allocation10], 0
    // Predicated region
    $region2: #{emb_forward.1} parent=1 // pred_check
      _
    $region3: #{emb_forward.1} parent=1 // pred_check_branch
      %25 = sbr.rel (0) target = $region5
    $region4: #{emb_forward.1} parent=1 // pred_region
      %s27 = ssub.s32 16, 16
      %28 = vsyncadd [#allocation4], %s27
      %s30 = sshll.u32 %s0, 4
      %s31 = int_to_ptr.vmem [resolvable:$true] %s30
      %33 = dma.vmem_to_smem %s31, 16, [#allocation2], [#allocation4]
    $region5: #{emb_forward.1} parent=1 // pred_fallthru
      _
    // Predicated region
    $region6: #{emb_forward.1} parent=1 // pred_check
      _
    $region7: #{emb_forward.1} parent=1 // pred_check_branch
      %35 = sbr.rel (0) target = $region9
    $region8: #{emb_forward.1} parent=1 // pred_region
      _
    $region9: #{emb_forward.1} parent=1 // pred_fallthru
      _
    // Predicated region
    $region10: #{emb_forward.1} parent=1 // pred_check
      _
    $region11: #{emb_forward.1} parent=1 // pred_check_branch
      %37 = sbr.rel (0) target = $region13
    $region12: #{emb_forward.1} parent=1 // pred_region
      _
    $region13: #{emb_forward.1} parent=1 // pred_fallthru
      _
    // Predicated region
    $region14: #{emb_forward.1} parent=1 // pred_check
      _
    $region15: #{emb_forward.1} parent=1 // pred_check_branch
      %39 = sbr.rel (0) target = $region17
    $region16: #{emb_forward.1} parent=1 // pred_region
      _
    $region17: #{emb_forward.1} parent=1 // pred_fallthru
      _
    // Predicated region
    $region18: #{emb_forward.1} parent=1 // pred_check
      _
    $region19: #{emb_forward.1} parent=1 // pred_check_branch
      %41 = sbr.rel (0) target = $region21
    $region20: #{emb_forward.1} parent=1 // pred_region
      _
    $region21: #{emb_forward.1} parent=1 // pred_fallthru
      _
    // Predicated region
    $region22: #{emb_forward.1} parent=1 // pred_check
      _
    $region23: #{emb_forward.1} parent=1 // pred_check_branch
      %43 = sbr.rel (0) target = $region25
    $region24: #{emb_forward.1} parent=1 // pred_region
      _
    $region25: #{emb_forward.1} parent=1 // pred_fallthru
      _
    // Predicated region
    $region26: #{emb_forward.1} parent=1 // pred_check
      _
    $region27: #{emb_forward.1} parent=1 // pred_check_branch
      %45 = sbr.rel (0) target = $region29
    $region28: #{emb_forward.1} parent=1 // pred_region
      _
    $region29: #{emb_forward.1} parent=1 // pred_fallthru
      _
    // Predicated region
    $region30: #{emb_forward.1} parent=1 // pred_check
      _
    $region31: #{emb_forward.1} parent=1 // pred_check_branch
      %47 = sbr.rel (0) target = $region33
    $region32: #{emb_forward.1} parent=1 // pred_region
      _
    $region33: #{emb_forward.1} parent=1 // pred_fallthru
      _
    // Predicated region
    $region34: #{emb_forward.1} parent=1 // pred_check
      _
    $region35: #{emb_forward.1} parent=1 // pred_check_branch
      %49 = sbr.rel (0) target = $region37
    $region36: #{emb_forward.1} parent=1 // pred_region
      _
    $region37: #{emb_forward.1} parent=1 // pred_fallthru
      _
    // Predicated region
    $region38: #{emb_forward.1} parent=1 // pred_check
      _
    $region39: #{emb_forward.1} parent=1 // pred_check_branch
      %51 = sbr.rel (0) target = $region41
    $region40: #{emb_forward.1} parent=1 // pred_region
      _
    $region41: #{emb_forward.1} parent=1 // pred_fallthru
      _
    // Predicated region
    $region42: #{emb_forward.1} parent=1 // pred_check
      _
    $region43: #{emb_forward.1} parent=1 // pred_check_branch
      %53 = sbr.rel (0) target = $region45
    $region44: #{emb_forward.1} parent=1 // pred_region
      _
    $region45: #{emb_forward.1} parent=1 // pred_fallthru
      _
    // Predicated region
    $region46: #{emb_forward.1} parent=1 // pred_check
      _
    $region47: #{emb_forward.1} parent=1 // pred_check_branch
      %55 = sbr.rel (0) target = $region49
    $region48: #{emb_forward.1} parent=1 // pred_region
      %56 = dma.done [#allocation4], 16
    $region49: #{emb_forward.1} parent=1 // pred_fallthru
      _
    %57 = sfence
    %s58 = sld [smem:[#allocation2]]
    %s59 = scalar_lea.vmem %s4, %s58
    %v60 = vld [vmem:[%s59] sm:$0x1]
    %vm61 = vcmask 253952
    %62 = vst.msk [vmem:[#allocation5] sm:$0x1] %vm61, %v60
    %s63 = sld [smem:[#allocation2 + $0x1]]
    %s64 = scalar_lea.vmem %s4, %s63
    %v65 = vld [vmem:[%s64] sm:$0x1]
    %66 = vst.msk [vmem:[#allocation5 + $0x1] sm:$0x1] %vm61, %v65
    %s67 = sld [smem:[#allocation2 + $0x2]]
    %s68 = scalar_lea.vmem %s4, %s67
    %v69 = vld [vmem:[%s68] sm:$0x1]
    %70 = vst.msk [vmem:[#allocation5 + $0x2] sm:$0x1] %vm61, %v69
    %s71 = sld [smem:[#allocation2 + $0x3]]
    %s72 = scalar_lea.vmem %s4, %s71
    %v73 = vld [vmem:[%s72] sm:$0x1]
    %74 = vst.msk [vmem:[#allocation5 + $0x3] sm:$0x1] %vm61, %v73
    %s75 = sld [smem:[#allocation2 + $0x4]]
    %s76 = scalar_lea.vmem %s4, %s75
    %v77 = vld [vmem:[%s76] sm:$0x1]
    %78 = vst.msk [vmem:[#allocation5 + $0x4] sm:$0x1] %vm61, %v77
    %s79 = sld [smem:[#allocation2 + $0x5]]
    %s80 = scalar_lea.vmem %s4, %s79
    %v81 = vld [vmem:[%s80] sm:$0x1]
    %82 = vst.msk [vmem:[#allocation5 + $0x5] sm:$0x1] %vm61, %v81
    %s83 = sld [smem:[#allocation2 + $0x6]]
    %s84 = scalar_lea.vmem %s4, %s83
    %v85 = vld [vmem:[%s84] sm:$0x1]
    %86 = vst.msk [vmem:[#allocation5 + $0x6] sm:$0x1] %vm61, %v85
    %s87 = sld [smem:[#allocation2 + $0x7]]
    %s88 = scalar_lea.vmem %s4, %s87
    %v89 = vld [vmem:[%s88] sm:$0x1]
    %90 = vst.msk [vmem:[#allocation5 + $0x7] sm:$0x1] %vm61, %v89
    %s91 = sld [smem:[#allocation2 + $0x8]]
    %s92 = scalar_lea.vmem %s4, %s91
    %v93 = vld [vmem:[%s92] sm:$0x1]
    %94 = vst.msk [vmem:[#allocation5 + $0x8] sm:$0x1] %vm61, %v93
    %s95 = sld [smem:[#allocation2 + $0x9]]
    %s96 = scalar_lea.vmem %s4, %s95
    %v97 = vld [vmem:[%s96] sm:$0x1]
    %98 = vst.msk [vmem:[#allocation5 + $0x9] sm:$0x1] %vm61, %v97
    %s99 = sld [smem:[#allocation2 + $0xa]]
    %s100 = scalar_lea.vmem %s4, %s99
    %v101 = vld [vmem:[%s100] sm:$0x1]
    %102 = vst.msk [vmem:[#allocation5 + $0xa] sm:$0x1] %vm61, %v101
    %s103 = sld [smem:[#allocation2 + $0xb]]
    %s104 = scalar_lea.vmem %s4, %s103
    %v105 = vld [vmem:[%s104] sm:$0x1]
    %106 = vst.msk [vmem:[#allocation5 + $0xb] sm:$0x1] %vm61, %v105
    %s107 = sld [smem:[#allocation2 + $0xc]]
    %s108 = scalar_lea.vmem %s4, %s107
    %v109 = vld [vmem:[%s108] sm:$0x1]
    %110 = vst.msk [vmem:[#allocation5 + $0xc] sm:$0x1] %vm61, %v109
    %s111 = sld [smem:[#allocation2 + $0xd]]
    %s112 = scalar_lea.vmem %s4, %s111
    %v113 = vld [vmem:[%s112] sm:$0x1]
    %114 = vst.msk [vmem:[#allocation5 + $0xd] sm:$0x1] %vm61, %v113
    %s115 = sld [smem:[#allocation2 + $0xe]]
    %s116 = scalar_lea.vmem %s4, %s115
    %v117 = vld [vmem:[%s116] sm:$0x1]
    %118 = vst.msk [vmem:[#allocation5 + $0xe] sm:$0x1] %vm61, %v117
    %s119 = sld [smem:[#allocation2 + $0xf]]
    %s120 = scalar_lea.vmem %s4, %s119
    %v121 = vld [vmem:[%s120] sm:$0x1]
    %122 = vst.msk [vmem:[#allocation5 + $0xf] sm:$0x1] %vm61, %v121
    %v123 = vld [vmem:[%s1] sm:$0xff]
    %v124 = vld [vmem:[%s1 + $0x8] sm:$0xff]
    %v125 = vld [vmem:[%s5] sm:$0x1]
    %127 = vset.pattern.permute.xlu0 0
    %128 = vperm.xlu0 %127, %v123
    %v129 = vpop.permute.xlu0 %128
    %132 = vset.pattern.permute.xlu0 0
    %133 = vperm.xlu0 %132, %v124
    %v134 = vpop.permute.xlu0 %133
    %v137 = vlaneseq
    %v138 = vshrl.u32 %v137, 7
    %v139 = vsub.s32 0, %v138
    %v140 = vrot.slane %v125, %v139
    %v142 = vmul.f32 %v129, %v140
    %v143 = vmul.f32 %v134, %v140
    %v144 = vld [vmem:[%s6] sm:$0x1]
    %v146 = vlaneseq
    %v147 = vshrl.u32 %v146, 7
    %v148 = vsub.s32 0, %v147
    %v149 = vrot.slane %v144, %v148
    %v151 = vadd.f32 %v142, %v149
    %v152 = vadd.f32 %v143, %v149
    %vm153 = vcmask 261120
    %154 = vst.msk [vmem:[#allocation6] sm:$0xff] %vm153, %v151
    %155 = vst.msk [vmem:[#allocation6 + $0x8] sm:$0xff] %vm153, %v152
    %v156 = vld [vmem:[%s2] sm:$0xff]
    %v157 = vld [vmem:[%s2 + $0x8] sm:$0xff]
    %v158 = vld [vmem:[%s7] sm:$0x1]
    %160 = vset.pattern.permute.xlu0 0
    %161 = vperm.xlu0 %160, %v156
    %v162 = vpop.permute.xlu0 %161
    %165 = vset.pattern.permute.xlu0 0
    %166 = vperm.xlu0 %165, %v157
    %v167 = vpop.permute.xlu0 %166
    %v170 = vlaneseq
    %v171 = vshrl.u32 %v170, 7
    %v172 = vsub.s32 0, %v171
    %v173 = vrot.slane %v158, %v172
    %v175 = vmul.f32 %v162, %v173
    %v176 = vmul.f32 %v167, %v173
    %v177 = vld [vmem:[%s8] sm:$0x1]
    %v179 = vlaneseq
    %v180 = vshrl.u32 %v179, 7
    %v181 = vsub.s32 0, %v180
    %v182 = vrot.slane %v177, %v181
    %v184 = vadd.f32 %v175, %v182
    %v185 = vadd.f32 %v176, %v182
    %186 = vst.msk [vmem:[#allocation8] sm:$0xff] %vm153, %v184
    %187 = vst.msk [vmem:[#allocation8 + $0x8] sm:$0xff] %vm153, %v185
    %v188 = vld [vmem:[%s3] sm:$0xff]
    %v189 = vld [vmem:[%s3 + $0x8] sm:$0xff]
    %v190 = vld [vmem:[%s9] sm:$0x1]
    %192 = vset.pattern.permute.xlu0 0
    %193 = vperm.xlu0 %192, %v188
    %v194 = vpop.permute.xlu0 %193
    %197 = vset.pattern.permute.xlu0 0
    %198 = vperm.xlu0 %197, %v189
    %v199 = vpop.permute.xlu0 %198
    %v202 = vlaneseq
    %v203 = vshrl.u32 %v202, 7
    %v204 = vsub.s32 0, %v203
    %v205 = vrot.slane %v190, %v204
    %v207 = vmul.f32 %v194, %v205
    %v208 = vmul.f32 %v199, %v205
    %v209 = vld [vmem:[%s10] sm:$0x1]
    %v211 = vlaneseq
    %v212 = vshrl.u32 %v211, 7
    %v213 = vsub.s32 0, %v212
    %v214 = vrot.slane %v209, %v213
    %v216 = vadd.f32 %v207, %v214
    %v217 = vadd.f32 %v208, %v214
    %218 = vst.msk [vmem:[#allocation9] sm:$0xff] %vm153, %v216
    %219 = vst.msk [vmem:[#allocation9 + $0x8] sm:$0xff] %vm153, %v217
    // Predicated region
    $region50: #{emb_forward.1} parent=1 // pred_check
      _
    $region51: #{emb_forward.1} parent=1 // pred_check_branch
      %221 = sbr.rel (0) target = $region53
    $region52: #{emb_forward.1} parent=1 // pred_region
      %s223 = ssub.s32 256, 256
      %224 = vsyncadd [#allocation3], %s223
      %s225 = sshll.u32 [#allocation5], 4
      %s226 = int_to_ptr.vmem [resolvable:$true] %s225
      %231 = dma.vmem_to_hbm [thread:$0]  %s226, 256, %s11, [#allocation3], 128, 128, 8
    $region53: #{emb_forward.1} parent=1 // pred_fallthru
      _
    // Predicated region
    $region54: #{emb_forward.1} parent=1 // pred_check
      _
    $region55: #{emb_forward.1} parent=1 // pred_check_branch
      %233 = sbr.rel (0) target = $region57
    $region56: #{emb_forward.1} parent=1 // pred_region
      %s235 = ssub.s32 256, 256
      %236 = vsyncadd [#allocation7], %s235
      %s237 = sshll.u32 [#allocation6], 4
      %s238 = int_to_ptr.vmem [resolvable:$true] %s237
      %243 = dma.vmem_to_hbm [thread:$0]  %s238, 256, %s12, [#allocation7], 128, 128, 8
    $region57: #{emb_forward.1} parent=1 // pred_fallthru
      _
    // Predicated region
    $region58: #{emb_forward.1} parent=1 // pred_check
      _
    $region59: #{emb_forward.1} parent=1 // pred_check_branch
      %245 = sbr.rel (0) target = $region61
    $region60: #{emb_forward.1} parent=1 // pred_region
      %s247 = ssub.s32 256, 256
      %248 = vsyncadd [#allocation7], %s247
      %s249 = sshll.u32 [#allocation8], 4
      %s250 = int_to_ptr.vmem [resolvable:$true] %s249
      %255 = dma.vmem_to_hbm [thread:$0]  %s250, 256, %s13, [#allocation7], 128, 128, 8
    $region61: #{emb_forward.1} parent=1 // pred_fallthru
      _
    // Predicated region
    $region62: #{emb_forward.1} parent=1 // pred_check
      _
    $region63: #{emb_forward.1} parent=1 // pred_check_branch
      %257 = sbr.rel (0) target = $region65
    $region64: #{emb_forward.1} parent=1 // pred_region
      %s259 = ssub.s32 256, 256
      %260 = vsyncadd [#allocation10], %s259
      %s261 = sshll.u32 [#allocation9], 4
      %s262 = int_to_ptr.vmem [resolvable:$true] %s261
      %267 = dma.vmem_to_hbm [thread:$0]  %s262, 256, %s14, [#allocation10], 128, 128, 8
    $region65: #{emb_forward.1} parent=1 // pred_fallthru
      _
    // Predicated region
    $region66: #{emb_forward.1} parent=1 // pred_check
      _
    $region67: #{emb_forward.1} parent=1 // pred_check_branch
      %269 = sbr.rel (0) target = $region69
    $region68: #{emb_forward.1} parent=1 // pred_region
      %270 = dma.done [#allocation3], 256
    $region69: #{emb_forward.1} parent=1 // pred_fallthru
      _
    // Predicated region
    $region70: #{emb_forward.1} parent=1 // pred_check
      _
    $region71: #{emb_forward.1} parent=1 // pred_check_branch
      %272 = sbr.rel (0) target = $region73
    $region72: #{emb_forward.1} parent=1 // pred_region
      %273 = dma.done [#allocation7], 256
    $region73: #{emb_forward.1} parent=1 // pred_fallthru
      _
    // Predicated region
    $region74: #{emb_forward.1} parent=1 // pred_check
      _
    $region75: #{emb_forward.1} parent=1 // pred_check_branch
      %275 = sbr.rel (0) target = $region77
    $region76: #{emb_forward.1} parent=1 // pred_region
      %276 = dma.done [#allocation7], 256
    $region77: #{emb_forward.1} parent=1 // pred_fallthru
      _
    // Predicated region
    $region78: #{emb_forward.1} parent=1 // pred_check
      _
    $region79: #{emb_forward.1} parent=1 // pred_check_branch
      %278 = sbr.rel (0) target = $region81
    $region80: #{emb_forward.1} parent=1 // pred_region
      %279 = dma.done [#allocation10], 256
    $region81: #{emb_forward.1} parent=1 // pred_fallthru
      _
    %280 = vsyncpa [#allocation3], 1
    %281 = vsyncpa [#allocation7], 1
    %282 = vsyncpa [#allocation10], 1
    %283 = vsyncpa [#allocation4], 1

</llo_original>
